<compile_context>
chip_gen: v7x
topology: tpu7x:2x2x1
jax: 0.10.0
libtpu: 0.0.40
codegen_flags: <defaults>
</compile_context>

<pallas_src>
import functools

import jax
import jax.numpy as jnp
from jax import lax
from jax.experimental import pallas as pl
from jax.experimental.pallas import tpu as pltpu

_EPS = 1e-8    # torch F.cosine_similarity eps (per-norm clamp, as in the reference)
_NEG = -1e30   # "minus infinity" that stays NaN-free through exp/max


def _contrastive_kernel(tau_ref, x_ref, yn_ref, out_ref,
                        xn_ref, m_ref, l_ref, diag_ref,
                        *, n_keys, padded_keys):
    qi = pl.program_id(0)
    ki = pl.program_id(1)
    nk = pl.num_programs(1)
    tq = x_ref.shape[0]
    tk = yn_ref.shape[0]

    @pl.when(ki == 0)
    def _init():
        # Normalize the query tile ONCE per query tile (not once per grid step) and
        # fold 1/tau into the per-row scale so the (tq, tk) similarity tile needs no
        # further elementwise scaling.
        x = x_ref[...].astype(jnp.float32)
        inv_tau = 1.0 / tau_ref[0]
        scale = lax.rsqrt(jnp.maximum(jnp.sum(x * x, axis=-1, keepdims=True),
                                      _EPS * _EPS)) * inv_tau
        xn_ref[...] = x * scale
        m_ref[...] = jnp.full_like(m_ref, _NEG)
        l_ref[...] = jnp.zeros_like(l_ref)
        diag_ref[...] = jnp.zeros_like(diag_ref)

    # Similarity tile on the MXU: (tq, dp) @ (tk, dp)^T.  Keys were pre-normalized
    # in the wrapper, queries carry the 1/tau-scaled normalization.
    z = lax.dot_general(xn_ref[...], yn_ref[...].astype(jnp.float32),
                        (((1,), (1,)), ((), ())),
                        preferred_element_type=jnp.float32)          # [tq, tk]

    row = lax.broadcasted_iota(jnp.int32, z.shape, 0) + qi * tq       # global row idx
    col = lax.broadcasted_iota(jnp.int32, z.shape, 1) + ki * tk       # global col idx

    # Diagonal logits: generalized for tq != tk -- accumulate global-index matches,
    # but only on key tiles that actually overlap this query tile's diagonal band.
    q_lo = qi * tq
    k_lo = ki * tk

    @pl.when(jnp.logical_and(k_lo < q_lo + tq, q_lo < k_lo + tk))
    def _grab_diag():
        diag_ref[...] += jnp.sum(jnp.where(row == col, z, 0.0), axis=1, keepdims=True)

    # Mask padded key columns out of the logsumexp (statically compiled out when B
    # is already tile-aligned).
    if n_keys != padded_keys:
        z = jnp.where(col < n_keys, z, _NEG)

    # Online logsumexp over the key axis (flash-attention style).
    m_prev = m_ref[...]
    m_new = jnp.maximum(m_prev, jnp.max(z, axis=1, keepdims=True))
    alpha = jnp.exp(m_prev - m_new)
    l_ref[...] = alpha * l_ref[...] + jnp.sum(jnp.exp(z - m_new), axis=1, keepdims=True)
    m_ref[...] = m_new

    # Per-row diag(log_softmax) at the last key tile.
    @pl.when(ki == nk - 1)
    def _finalize():
        out_ref[...] = diag_ref[...] - (m_ref[...] + jnp.log(l_ref[...]))


def _round_up(n, m):
    return ((n + m - 1) // m) * m


def _cdiv(a, b):
    return (a + b - 1) // b


def _squeeze_contrastive(a):
    """[B,1,D] / [1,B,D] / [B,D]  ->  [B,D]."""
    a = jnp.asarray(a)
    if a.ndim == 3:
        if a.shape[0] == 1:
            a = a[0]
        elif a.shape[1] == 1:
            a = a[:, 0]
        else:
            raise ValueError(f"expected one broadcast dim of size 1, got {a.shape}")
    if a.ndim != 2:
        raise ValueError(f"expected rank-2 or rank-3 input, got {a.shape}")
    return a


def _choose_tiles(B, dp, x_itemsize, tq_max, tk_max, budget_bytes):
    """Pick (tq, tk, padded_B): tq a multiple of tk, VMEM-budgeted, and >= 2 query
    tiles whenever >= 2 key tiles exist (keeps the parallel axis useful on v7x)."""

    def vmem_bytes(tq, tk):
        return (2 * tq * dp * x_itemsize   # x tile, double-buffered
                + 2 * tk * dp * 4          # pre-normalized y tile, double-buffered
                + tq * dp * 4              # normalized-x VMEM scratch
                + 16 * tq * 4)             # (tq,1) accumulators / output

    tk = min(tk_max, _round_up(B, 8))
    while tk > 128 and vmem_bytes(tk, tk) > budget_bytes:    # pathological huge-D guard
        tk = max(8, _round_up(tk // 2, 8))

    n_k = _cdiv(_round_up(B, 8), tk)
    f = max(1, tq_max // tk)                # key tiles per query tile
    if n_k >= 2:
        f = min(f, max(1, n_k // 2))        # keep >= 2 query tiles for megacore
    else:
        f = 1
    while f > 1 and vmem_bytes(f * tk, tk) > budget_bytes:
        f -= 1

    tq = f * tk
    bp = _round_up(B, tq)                   # multiple of both tq and tk
    return tq, tk, bp, vmem_bytes(tq, tk)


@functools.partial(jax.jit, static_argnames=("tq_max", "tk_max"))
def learned_contrastive_loss(x, y, tau, *, tq_max=512, tk_max=256):
    """-mean(diag(log_softmax(cos_sim(x, y, dim=-1) / tau, axis=1)))  (square case)."""
    x2 = _squeeze_contrastive(x)
    y2 = _squeeze_contrastive(y)
    if x2.shape[1] != y2.shape[1]:
        raise ValueError(f"feature dims differ: {x2.shape} vs {y2.shape}")
    if x2.shape[0] != y2.shape[0]:
        # torch diag()+mean() would use min(B1,B2); only the square case is supported.
        raise ValueError(f"non-square similarity not supported: {x2.shape} vs {y2.shape}")
    B, D = x2.shape

    # Feature padding: 256-aligned (full MXU width on v6e/v7x) when D is big enough
    # to matter, 128 otherwise.  Zero columns change neither norms nor dot products.
    dp = _round_up(D, 256 if D > 128 else 128)
    tq, tk, bp, tile_bytes = _choose_tiles(B, dp, x2.dtype.itemsize,
                                           tq_max, tk_max, budget_bytes=48 << 20)

    # x keeps its native dtype through the DMA; it is normalized in-kernel once per
    # query tile.  y is row-normalized here in one fused BxD pass (kept in f32 for
    # precision of the MXU pass) so the kernel never redoes key-side rsqrt work.
    xp = jnp.pad(x2, ((0, bp - B), (0, dp - D)))
    y32 = y2.astype(jnp.float32)
    y_n = y32 * lax.rsqrt(jnp.maximum(jnp.sum(y32 * y32, axis=-1, keepdims=True),
                                      _EPS * _EPS))
    yp = jnp.pad(y_n, ((0, bp - B), (0, dp - D)))
    tau_arr = jnp.asarray(tau, jnp.float32).reshape(1)

    n_q, n_k = bp // tq, bp // tk
    kernel = functools.partial(_contrastive_kernel, n_keys=B, padded_keys=bp)

    # Explicit VMEM budget: v7x has only 64 MiB physical (32 MiB scoped default).
    vmem_limit = min(max(int(tile_bytes * 1.5) + (4 << 20), 32 << 20), 64 << 20)

    per_row = pl.pallas_call(
        kernel,
        out_shape=jax.ShapeDtypeStruct((bp, 1), jnp.float32),
        grid=(n_q, n_k),                                      # (query tiles, key tiles)
        in_specs=[
            pl.BlockSpec(memory_space=pltpu.SMEM),            # tau (scalar)
            pl.BlockSpec((tq, dp), lambda qi, ki: (qi, 0)),   # x tile (queries)
            pl.BlockSpec((tk, dp), lambda qi, ki: (ki, 0)),   # normalized y tile (keys)
        ],
        out_specs=pl.BlockSpec((tq, 1), lambda qi, ki: (qi, 0)),
        scratch_shapes=[
            pltpu.VMEM((tq, dp), jnp.float32),   # normalized query tile (x * rsqrt/tau)
            pltpu.VMEM((tq, 1), jnp.float32),    # running max (per query row)
            pltpu.VMEM((tq, 1), jnp.float32),    # running sum-exp
            pltpu.VMEM((tq, 1), jnp.float32),    # diagonal logits (accumulated)
        ],
        compiler_params=pltpu.CompilerParams(
            dimension_semantics=("parallel", "arbitrary"),
            vmem_limit_bytes=vmem_limit),
    )(tau_arr, xp, yp)

    # TODO(synk): the (tq,1) output lowers to masked partial stores; it is tiny, so
    # re-laying it out into a lane-dense slab was judged not worth the extra transpose.
    # loss = -mean over the B valid rows (1/B folded into one scalar multiply).
    return -(jnp.sum(per_row[:B, 0]) / B)


def _reference_loss(x, y, tau):
    xb, yb = jnp.broadcast_arrays(jnp.asarray(x, jnp.float32),
                                  jnp.asarray(y, jnp.float32))
    dot = jnp.sum(xb * yb, axis=-1)
    nx = jnp.maximum(jnp.sqrt(jnp.sum(xb * xb, axis=-1)), _EPS)
    ny = jnp.maximum(jnp.sqrt(jnp.sum(yb * yb, axis=-1)), _EPS)
    sim = dot / (nx * ny)
    logsm = jax.nn.log_softmax(sim / tau, axis=1)
    return -jnp.mean(jnp.diagonal(logsm))


if __name__ == "__main__":
    key = jax.random.PRNGKey(0)
    k1, k2, k3, k4 = jax.random.split(key, 4)

    # Case 1: standard contrastive layout at toy size (single-tile path).
    B1, D1 = 8, 32
    x1 = jax.random.normal(k1, (B1, 1, D1), dtype=jnp.float32)
    y1 = jax.random.normal(k2, (1, B1, D1), dtype=jnp.float32)
    tau1 = jnp.ones([], dtype=jnp.float32)            # nn.Parameter(torch.ones([]))
    loss1 = learned_contrastive_loss(x1, y1, tau1)
    jax.block_until_ready(loss1)
    ref1 = _reference_loss(x1, y1, tau1)
    # Tolerance accounts for MXU default-precision f32 matmul passes.
    assert jnp.allclose(loss1, ref1, atol=2e-3, rtol=2e-3), (loss1, ref1)

    # Case 2: multi-tile grid with tq != tk (2 query tiles x 4 key tiles), padded
    # keys, generalized/accumulated diagonal capture and the online-LSE path.
    B2, D2 = 200, 96
    x2 = jax.random.normal(k3, (B2, 1, D2), dtype=jnp.float32)
    y2 = jax.random.normal(k4, (1, B2, D2), dtype=jnp.float32)
    tau2 = jnp.asarray(0.7, jnp.float32)
    loss2 = learned_contrastive_loss(x2, y2, tau2, tq_max=128, tk_max=64)
    jax.block_until_ready(loss2)
    ref2 = _reference_loss(x2, y2, tau2)
    assert jnp.allclose(loss2, ref2, atol=2e-3, rtol=2e-3), (loss2, ref2)

    # TODO(synk): non-square (B1 != B2) similarity matrices (torch uses min(B1,B2) for
    # the diagonal) are rejected rather than emulated; `margin` is unused in the torch
    # forward and therefore omitted.
    print("KERNEL_OK")
</pallas_src>

<mosaic_0001>
module attributes {stable_mosaic.version = 11 : i64} {
  func.func @_contrastive_kernel(%arg0: i32, %arg1: i32, %arg2: memref<1xf32, #tpu.memory_space<smem>>, %arg3: memref<8x128xf32, #tpu.memory_space<vmem>>, %arg4: memref<8x128xf32, #tpu.memory_space<vmem>>, %arg5: memref<8x1xf32, #tpu.memory_space<vmem>>, %arg6: memref<8x128xf32, #tpu.memory_space<vmem>>, %arg7: memref<8x1xf32, #tpu.memory_space<vmem>>, %arg8: memref<8x1xf32, #tpu.memory_space<vmem>>, %arg9: memref<8x1xf32, #tpu.memory_space<vmem>>) attributes {dimension_semantics = [#tpu.dimension_semantics<parallel>, #tpu.dimension_semantics<arbitrary>], iteration_bounds = array<i64: 1, 1>, scalar_prefetch = 0 : i64, scratch_operands = 4 : i64, tpu.core_type = #tpu.core_type<tc>, window_params = [{transform_indices = @transform_0, window_bounds = array<i64: 1>}, {transform_indices = @transform_1, window_bounds = array<i64: 8, 128>}, {transform_indices = @transform_2, window_bounds = array<i64: 8, 128>}, {transform_indices = @transform_3, window_bounds = array<i64: 8, 1>}]} {
    %c0_i32 = arith.constant 0 : i32
    %0 = arith.cmpi eq, %arg1, %c0_i32 : i32
    %1 = arith.extui %0 : i1 to i32
    %c0_i32_0 = arith.constant 0 : i32
    %2 = arith.cmpi ne, %1, %c0_i32_0 : i32
    scf.if %2 {
      %c0_22 = arith.constant 0 : index
      %c0_23 = arith.constant 0 : index
      %42 = vector.load %arg3[%c0_22, %c0_23] : memref<8x128xf32, #tpu.memory_space<vmem>>, vector<8x128xf32>
      %c0_24 = arith.constant 0 : index
      %43 = memref.load %arg2[%c0_24] : memref<1xf32, #tpu.memory_space<smem>>
      %cst_25 = arith.constant 1.000000e+00 : f32
      %44 = arith.divf %cst_25, %43 : f32
      %45 = arith.mulf %42, %42 : vector<8x128xf32>
      %cst_26 = arith.constant dense<0.000000e+00> : vector<8xf32>
      %46 = vector.multi_reduction <add>, %45, %cst_26 [1] : vector<8x128xf32> to vector<8xf32>
      %47 = vector.shape_cast %46 : vector<8xf32> to vector<8x1xf32>
      %cst_27 = arith.constant 1.000000e-16 : f32
      %48 = vector.broadcast %cst_27 : f32 to vector<8x1xf32>
      %49 = arith.maximumf %47, %48 : vector<8x1xf32>
      %50 = math.rsqrt %49 : vector<8x1xf32>
      %51 = vector.broadcast %44 : f32 to vector<8x1xf32>
      %52 = arith.mulf %50, %51 : vector<8x1xf32>
      %53 = vector.broadcast %52 : vector<8x1xf32> to vector<8x128xf32>
      %54 = arith.mulf %42, %53 : vector<8x128xf32>
      %c0_28 = arith.constant 0 : index
      %c0_29 = arith.constant 0 : index
      %55 = vector.load %arg6[%c0_28, %c0_29] : memref<8x128xf32, #tpu.memory_space<vmem>>, vector<8x128xf32>
      tpu.vector_store %arg6[%c0_28, %c0_29], %54 {strides = array<i32>} : memref<8x128xf32, #tpu.memory_space<vmem>>, vector<8x128xf32>,
      %cst_30 = arith.constant -1.000000e+30 : f32
      %56 = vector.broadcast %cst_30 : f32 to vector<8x1xf32>
      %c0_31 = arith.constant 0 : index
      %c0_32 = arith.constant 0 : index
      %57 = vector.load %arg7[%c0_31, %c0_32] : memref<8x1xf32, #tpu.memory_space<vmem>>, vector<8x1xf32>
      tpu.vector_store %arg7[%c0_31, %c0_32], %56 {strides = array<i32>} : memref<8x1xf32, #tpu.memory_space<vmem>>, vector<8x1xf32>,
      %cst_33 = arith.constant 0.000000e+00 : f32
      %58 = vector.broadcast %cst_33 : f32 to vector<8x1xf32>
      %c0_34 = arith.constant 0 : index
      %c0_35 = arith.constant 0 : index
      %59 = vector.load %arg8[%c0_34, %c0_35] : memref<8x1xf32, #tpu.memory_space<vmem>>, vector<8x1xf32>
      tpu.vector_store %arg8[%c0_34, %c0_35], %58 {strides = array<i32>} : memref<8x1xf32, #tpu.memory_space<vmem>>, vector<8x1xf32>,
      %cst_36 = arith.constant 0.000000e+00 : f32
      %60 = vector.broadcast %cst_36 : f32 to vector<8x1xf32>
      %c0_37 = arith.constant 0 : index
      %c0_38 = arith.constant 0 : index
      %61 = vector.load %arg9[%c0_37, %c0_38] : memref<8x1xf32, #tpu.memory_space<vmem>>, vector<8x1xf32>
      tpu.vector_store %arg9[%c0_37, %c0_38], %60 {strides = array<i32>} : memref<8x1xf32, #tpu.memory_space<vmem>>, vector<8x1xf32>,
    } else {
    }
    %c0 = arith.constant 0 : index
    %c0_1 = arith.constant 0 : index
    %3 = vector.load %arg6[%c0, %c0_1] : memref<8x128xf32, #tpu.memory_space<vmem>>, vector<8x128xf32>
    %c0_2 = arith.constant 0 : index
    %c0_3 = arith.constant 0 : index
    %4 = vector.load %arg4[%c0_2, %c0_3] : memref<8x128xf32, #tpu.memory_space<vmem>>, vector<8x128xf32>
    %cst = arith.constant dense<0.000000e+00> : vector<8x8xf32>
    %5 = tpu.matmul %3, %4, %cst {dimension_numbers = #tpu.dot_dimension_numbers<[1], [1], [0], [0], [0, 0, 1, 0], [], []>} : vector<8x128xf32>, vector<8x128xf32>, vector<8x8xf32> -> vector<8x8xf32>
    %6 = tpu.iota {dimensions = array<i32: 0>} : vector<8x8xi32>
    %c8_i32 = arith.constant 8 : i32
    %7 = arith.muli %arg0, %c8_i32 : i32
    %8 = vector.broadcast %7 : i32 to vector<8x8xi32>
    %9 = arith.addi %6, %8 : vector<8x8xi32>
    %10 = tpu.iota {dimensions = array<i32: 1>} : vector<8x8xi32>
    %c8_i32_4 = arith.constant 8 : i32
    %11 = arith.muli %arg1, %c8_i32_4 : i32
    %12 = vector.broadcast %11 : i32 to vector<8x8xi32>
    %13 = arith.addi %10, %12 : vector<8x8xi32>
    %c8_i32_5 = arith.constant 8 : i32
    %14 = arith.muli %arg0, %c8_i32_5 : i32
    %c8_i32_6 = arith.constant 8 : i32
    %15 = arith.muli %arg1, %c8_i32_6 : i32
    %c8_i32_7 = arith.constant 8 : i32
    %16 = arith.addi %14, %c8_i32_7 : i32
    %17 = arith.cmpi slt, %15, %16 : i32
    %c8_i32_8 = arith.constant 8 : i32
    %18 = arith.addi %15, %c8_i32_8 : i32
    %19 = arith.cmpi slt, %14, %18 : i32
    %20 = arith.andi %17, %19 : i1
    %21 = arith.extui %20 : i1 to i32
    %c0_i32_9 = arith.constant 0 : i32
    %22 = arith.cmpi ne, %21, %c0_i32_9 : i32
    scf.if %22 {
      %c0_22 = arith.constant 0 : index
      %c0_23 = arith.constant 0 : index
      %42 = vector.load %arg9[%c0_22, %c0_23] : memref<8x1xf32, #tpu.memory_space<vmem>>, vector<8x1xf32>
      %43 = arith.cmpi eq, %9, %13 : vector<8x8xi32>
      %cst_24 = arith.constant 0.000000e+00 : f32
      %44 = vector.broadcast %cst_24 : f32 to vector<8x8xf32>
      %45 = arith.select %43, %5, %44 : vector<8x8xi1>, vector<8x8xf32>
      %cst_25 = arith.constant dense<0.000000e+00> : vector<8xf32>
      %46 = vector.multi_reduction <add>, %45, %cst_25 [1] : vector<8x8xf32> to vector<8xf32>
      %47 = vector.shape_cast %46 : vector<8xf32> to vector<8x1xf32>
      %48 = arith.addf %42, %47 : vector<8x1xf32>
      %c0_26 = arith.constant 0 : index
      %c0_27 = arith.constant 0 : index
      %49 = vector.load %arg9[%c0_26, %c0_27] : memref<8x1xf32, #tpu.memory_space<vmem>>, vector<8x1xf32>
      tpu.vector_store %arg9[%c0_26, %c0_27], %48 {strides = array<i32>} : memref<8x1xf32, #tpu.memory_space<vmem>>, vector<8x1xf32>,
    } else {
    }
    %c0_10 = arith.constant 0 : index
    %c0_11 = arith.constant 0 : index
    %23 = vector.load %arg7[%c0_10, %c0_11] : memref<8x1xf32, #tpu.memory_space<vmem>>, vector<8x1xf32>
    %cst_12 = arith.constant dense<0xFF800000> : vector<8xf32>
    %24 = vector.multi_reduction <maximumf>, %5, %cst_12 [1] : vector<8x8xf32> to vector<8xf32>
    %25 = vector.shape_cast %24 : vector<8xf32> to vector<8x1xf32>
    %26 = arith.maximumf %23, %25 : vector<8x1xf32>
    %27 = arith.subf %23, %26 : vector<8x1xf32>
    %28 = math.exp %27 : vector<8x1xf32>
    %c0_13 = arith.constant 0 : index
    %c0_14 = arith.constant 0 : index
    %29 = vector.load %arg8[%c0_13, %c0_14] : memref<8x1xf32, #tpu.memory_space<vmem>>, vector<8x1xf32>
    %30 = arith.mulf %28, %29 : vector<8x1xf32>
    %31 = vector.broadcast %26 : vector<8x1xf32> to vector<8x8xf32>
    %32 = arith.subf %5, %31 : vector<8x8xf32>
    %33 = math.exp %32 : vector<8x8xf32>
    %cst_15 = arith.constant dense<0.000000e+00> : vector<8xf32>
    %34 = vector.multi_reduction <add>, %33, %cst_15 [1] : vector<8x8xf32> to vector<8xf32>
    %35 = vector.shape_cast %34 : vector<8xf32> to vector<8x1xf32>
    %36 = arith.addf %30, %35 : vector<8x1xf32>
    %c0_16 = arith.constant 0 : index
    %c0_17 = arith.constant 0 : index
    %37 = vector.load %arg8[%c0_16, %c0_17] : memref<8x1xf32, #tpu.memory_space<vmem>>, vector<8x1xf32>
    tpu.vector_store %arg8[%c0_16, %c0_17], %36 {strides = array<i32>} : memref<8x1xf32, #tpu.memory_space<vmem>>, vector<8x1xf32>,
    %c0_18 = arith.constant 0 : index
    %c0_19 = arith.constant 0 : index
    %38 = vector.load %arg7[%c0_18, %c0_19] : memref<8x1xf32, #tpu.memory_space<vmem>>, vector<8x1xf32>
    tpu.vector_store %arg7[%c0_18, %c0_19], %26 {strides = array<i32>} : memref<8x1xf32, #tpu.memory_space<vmem>>, vector<8x1xf32>,
    %c0_i32_20 = arith.constant 0 : i32
    %39 = arith.cmpi eq, %arg1, %c0_i32_20 : i32
    %40 = arith.extui %39 : i1 to i32
    %c0_i32_21 = arith.constant 0 : i32
    %41 = arith.cmpi ne, %40, %c0_i32_21 : i32
    scf.if %41 {
      %c0_22 = arith.constant 0 : index
      %c0_23 = arith.constant 0 : index
      %42 = vector.load %arg9[%c0_22, %c0_23] : memref<8x1xf32, #tpu.memory_space<vmem>>, vector<8x1xf32>
      %c0_24 = arith.constant 0 : index
      %c0_25 = arith.constant 0 : index
      %43 = vector.load %arg7[%c0_24, %c0_25] : memref<8x1xf32, #tpu.memory_space<vmem>>, vector<8x1xf32>
      %c0_26 = arith.constant 0 : index
      %c0_27 = arith.constant 0 : index
      %44 = vector.load %arg8[%c0_26, %c0_27] : memref<8x1xf32, #tpu.memory_space<vmem>>, vector<8x1xf32>
      %45 = math.log %44 : vector<8x1xf32>
      %46 = arith.addf %43, %45 : vector<8x1xf32>
      %47 = arith.subf %42, %46 : vector<8x1xf32>
      %c0_28 = arith.constant 0 : index
      %c0_29 = arith.constant 0 : index
      %48 = vector.load %arg5[%c0_28, %c0_29] : memref<8x1xf32, #tpu.memory_space<vmem>>, vector<8x1xf32>
      tpu.vector_store %arg5[%c0_28, %c0_29], %47 {strides = array<i32>} : memref<8x1xf32, #tpu.memory_space<vmem>>, vector<8x1xf32>,
    } else {
    }
    return
  }
  func.func @transform_0(%arg0: i32, %arg1: i32) -> i32 {
    %c0_i32 = arith.constant 0 : i32
    %c0_i32_0 = arith.constant 0 : i32
    return %c0_i32 : i32
  }
  func.func @transform_1(%arg0: i32, %arg1: i32) -> (i32, i32) {
    %c0_i32 = arith.constant 0 : i32
    %c0_i32_0 = arith.constant 0 : i32
    return %arg0, %c0_i32 : i32, i32
  }
  func.func @transform_2(%arg0: i32, %arg1: i32) -> (i32, i32) {
    %c0_i32 = arith.constant 0 : i32
    %c0_i32_0 = arith.constant 0 : i32
    return %arg1, %c0_i32 : i32, i32
  }
  func.func @transform_3(%arg0: i32, %arg1: i32) -> (i32, i32) {
    %c0_i32 = arith.constant 0 : i32
    %c0_i32_0 = arith.constant 0 : i32
    return %arg0, %c0_i32 : i32, i32
  }
}

</mosaic_0001>

<llo_original>
// kernel: learned_contrastive_loss.1
$region0: #{learned_contrastive_loss.1}
  #allocation0 [shape = 'u32[]', space=smem, size = 0x4, offset = 0x4, fixed_abs, tag = 'smem constant byte address 0x4 - core index']
  #allocation1 [shape = 'u32[144,128]{1,0:T(1,128)}', space=vmem, size = 0x12000, scoped, tag = 'internal scratch']
  #allocation2 [shape = 'f32[8,128]{1,0:T(8,128)}', space=vmem, size = 0x1000, scoped, tag = 'scratch operand']
  #allocation3 [shape = 'f32[8,1]{1,0:T(8,128)}', space=vmem, size = 0x1000, scoped, tag = 'scratch operand']
  #allocation4 [shape = 'f32[8,1]{1,0:T(8,128)}', space=vmem, size = 0x1000, scoped, tag = 'scratch operand']
  #allocation5 [shape = 'f32[8,1]{1,0:T(8,128)}', space=vmem, size = 0x1000, scoped, tag = 'scratch operand']
  #allocation6 [shape = 'f32[1]{0:T(128)S(6)}', space=smem, size = 0x200, scoped, tag = 'scoped memory for learned_contrastive_loss.1']
  %s0 = inlined_call_operand.<no memory space> [shape: f32[1], index: 0, kind: input, shape index: {}]
  %s1 = inlined_call_operand.vmem [shape: f32[8,128], index: 1, kind: input, shape index: {}]
  %s2 = inlined_call_operand.vmem [shape: f32[8,128], index: 2, kind: input, shape index: {}]
  %s3 = inlined_call_operand.vmem [shape: f32[8,1], index: 3, kind: output, shape index: {}]
  %s4 = sld [smem:[#allocation0]]
  $region34: #{learned_contrastive_loss.1} parent=0
    _
  %s6 = ssub.s32 1, %s4
  %s7 = scalar_select 0, %s6, %s4
  %8 = sst [smem:[#allocation6]] %s0
  // Predicated region
  $region2: #{learned_contrastive_loss.1} parent=0 // pred_check
    _
  $region3: #{learned_contrastive_loss.1} parent=0 // pred_check_branch
    %10 = sbr.rel (0) target = $region5
  $region4: #{learned_contrastive_loss.1} parent=0 // pred_region
    _
  $region5: #{learned_contrastive_loss.1} parent=0 // pred_fallthru
    _
  // Predicated region
  $region6: #{learned_contrastive_loss.1} parent=0 // pred_check
    _
  $region7: #{learned_contrastive_loss.1} parent=0 // pred_check_branch
    %12 = sbr.rel (0) target = $region9
  $region8: #{learned_contrastive_loss.1} parent=0 // pred_region
    _
  $region9: #{learned_contrastive_loss.1} parent=0 // pred_fallthru
    _
  // Predicated region
  $region10: #{learned_contrastive_loss.1} parent=0 // pred_check
    _
  $region11: #{learned_contrastive_loss.1} parent=0 // pred_check_branch
    %14 = sbr.rel (0) target = $region13
  $region12: #{learned_contrastive_loss.1} parent=0 // pred_region
    _
  $region13: #{learned_contrastive_loss.1} parent=0 // pred_fallthru
    _
  %p15 = scmp.eq.s32.totalorder 0, 0
  // Predicated region
  $region14: #{learned_contrastive_loss.1} parent=0 // pred_check
    %p16 = pneg %p15
  $region15: #{learned_contrastive_loss.1} parent=0 // pred_check_branch
    %18 = sbr.rel (%p16) target = $region17
  $region16: #{learned_contrastive_loss.1} parent=0 // pred_region
    %v19 = vld [vmem:[%s1] sm:$0xff]
    %s20 = sld [smem:[#allocation6]]
    %v21 = vstv %s20
    %v22 = vrcp.pop %v21
    %s23 = vtos %v22
    %v24 = vmul.f32 %v19, %v19
    %25 = vadd.xlane.f32.xlu0 %v24
    %v26 = vpop.xlane.xlu0 %25
    %v27 = vmax.f32 %v26, 1e-16
    %v28 = vrsqrt.pop %v27
    %v29 = vstv %s23
    %v30 = vmul.f32 %v28, %v29
    %v31 = vmul.f32 %v19, %v30
    %32 = vst [vmem:[#allocation2] sm:$0xff] %v31
    %vm33 = vcmask 7168
    %34 = vst.msk [vmem:[#allocation3] sm:$0xff] %vm33, -1e+30
    %35 = vst.msk [vmem:[#allocation4] sm:$0xff] %vm33, 0.0
    %36 = vst.msk [vmem:[#allocation5] sm:$0xff] %vm33, 0.0
  $region17: #{learned_contrastive_loss.1} parent=0 // pred_fallthru
    _
  %v37 = vld [vmem:[#allocation2] sm:$0xff]
  %v38 = vld [vmem:[%s2] sm:$0xff]
  %39 = vmatprep.subr.mxu0 0.0
  %40 = vmatpush1.xpose.msra.mxu0 %v38
  %41 = vmatprep.subr.mxu0 0.0
  %42 = vmatpush1.xpose.msra.mxu0 0.0
  %43 = vmatprep.subr.mxu0 0.0
  %44 = vmatpush1.xpose.msra.mxu0 0.0
  %45 = vmatprep.subr.mxu0 0.0
  %46 = vmatpush1.xpose.msra.mxu0 0.0
  %47 = vmatprep.subr.mxu0 0.0
  %48 = vmatpush1.xpose.msra.mxu0 0.0
  %49 = vmatprep.subr.mxu0 0.0
  %50 = vmatpush1.xpose.msra.mxu0 0.0
  %51 = vmatprep.subr.mxu0 0.0
  %52 = vmatpush1.xpose.msra.mxu0 0.0
  %53 = vmatprep.subr.mxu0 0.0
  %54 = vmatpush1.xpose.msra.mxu0 0.0
  %55 = vmatprep.subr.mxu0 0.0
  %56 = vmatpush1.xpose.msra.mxu0 0.0
  %57 = vmatprep.subr.mxu0 0.0
  %58 = vmatpush1.xpose.msra.mxu0 0.0
  %59 = vmatprep.subr.mxu0 0.0
  %60 = vmatpush1.xpose.msra.mxu0 0.0
  %61 = vmatprep.subr.mxu0 0.0
  %62 = vmatpush1.xpose.msra.mxu0 0.0
  %63 = vmatprep.subr.mxu0 0.0
  %64 = vmatpush1.xpose.msra.mxu0 0.0
  %65 = vmatprep.subr.mxu0 0.0
  %66 = vmatpush1.xpose.msra.mxu0 0.0
  %67 = vmatprep.subr.mxu0 0.0
  %68 = vmatpush1.xpose.msra.mxu0 0.0
  %69 = vmatprep.subr.mxu0 0.0
  %70 = vmatpush1.xpose.msra.mxu0 0.0
  %71 = vmatprep.subr.mxu0 0.0
  %72 = vmatpush1.xpose.msra.mxu0 0.0
  %73 = vmatprep.subr.mxu0 0.0
  %74 = vmatpush1.xpose.msra.mxu0 0.0
  %75 = vmatprep.subr.mxu0 0.0
  %76 = vmatpush1.xpose.msra.mxu0 0.0
  %77 = vmatprep.subr.mxu0 0.0
  %78 = vmatpush1.xpose.msra.mxu0 0.0
  %79 = vmatprep.subr.mxu0 0.0
  %80 = vmatpush1.xpose.msra.mxu0 0.0
  %81 = vmatprep.subr.mxu0 0.0
  %82 = vmatpush1.xpose.msra.mxu0 0.0
  %83 = vmatprep.subr.mxu0 0.0
  %84 = vmatpush1.xpose.msra.mxu0 0.0
  %85 = vmatprep.subr.mxu0 0.0
  %86 = vmatpush1.xpose.msra.mxu0 0.0
  %87 = vmatprep.subr.mxu0 0.0
  %88 = vmatpush1.xpose.msra.mxu0 0.0
  %89 = vmatprep.subr.mxu0 0.0
  %90 = vmatpush1.xpose.msra.mxu0 0.0
  %91 = vmatprep.subr.mxu0 0.0
  %92 = vmatpush1.xpose.msra.mxu0 0.0
  %93 = vmatprep.subr.mxu0 0.0
  %94 = vmatpush1.xpose.msra.mxu0 0.0
  %95 = vmatprep.subr.mxu0 0.0
  %96 = vmatpush1.xpose.msra.mxu0 0.0
  %97 = vmatprep.subr.mxu0 0.0
  %98 = vmatpush1.xpose.msra.mxu0 0.0
  %99 = vmatprep.subr.mxu0 0.0
  %100 = vmatpush1.xpose.msra.mxu0 0.0
  %101 = vmatprep.subr.mxu0 0.0
  %102 = vmatpush1.xpose.msra.mxu0 0.0
  %103 = vmatprep.mubr.f32.mxu0 0.0
  %104 = vmatmul.mubr.f32.gmra.mrb[0].mxu0 %v37
  %v105 = vpop.f32.mrb[0].mxu0
  %v106 = vadd.f32 0.0, %v105
  %v107 = vpop.f32.mrb[0].mxu0
  %108 = vdwg.mxu0
  %v109 = vlaneseq
  %v110 = vshrl.u32 %v109, 7
  %s111 = smul.u32 0, 8
  %v112 = vstv %s111
  %v113 = vadd.s32 %v110, %v112
  %v114 = vlaneseq
  %v115 = vand.u32 %v114, 127
  %s116 = smul.u32 0, 8
  %v117 = vstv %s116
  %v118 = vadd.s32 %v115, %v117
  %s119 = sadd.s32 %s111, 8
  %p120 = scmp.lt.s32.totalorder %s116, %s119
  %s121 = sadd.s32 %s116, 8
  %p122 = scmp.lt.s32.totalorder %s111, %s121
  %p123 = pnand %p120, %p122
  %p124 = pneg %p123
  // Predicated region
  $region18: #{learned_contrastive_loss.1} parent=0 // pred_check
    _
  $region19: #{learned_contrastive_loss.1} parent=0 // pred_check_branch
    %126 = sbr.rel (%p123) target = $region21
  $region20: #{learned_contrastive_loss.1} parent=0 // pred_region
    %v127 = vld [vmem:[#allocation5] sm:$0xff]
    %vm128 = vcmp.eq.s32.totalorder %v113, %v118
    %v129 = vsel %vm128, %v106, 0.0
    %vm130 = vcmask 64512
    %v131 = vsel %vm130, %v129, 0.0
    %132 = vadd.xlane.f32.xlu0 %v131
    %v133 = vpop.xlane.xlu0 %132
    %v134 = vadd.f32 %v127, %v133
    %vm135 = vcmask 7168
    %136 = vst.msk [vmem:[#allocation5] sm:$0xff] %vm135, %v134
  $region21: #{learned_contrastive_loss.1} parent=0 // pred_fallthru
    _
  %v137 = vld [vmem:[#allocation3] sm:$0xff]
  %vm138 = vcmask 64512
  %v139 = vsel %vm138, %v106, -inf
  %140 = vmax.xlane.f32.xlu0 %v139
  %v141 = vpop.xlane.xlu0 %140
  %v142 = vmax.f32 %v137, %v141
  %v143 = vsub.f32 %v137, %v142
  %v144 = vmul.f32 %v143, 1.442695
  %v145 = vpow.pop %v144
  %v146 = vld [vmem:[#allocation4] sm:$0xff]
  %v147 = vmul.f32 %v145, %v146
  %149 = vset.pattern.permute.xlu0 0
  %150 = vperm.xlu0 %149, %v142
  %v151 = vpop.permute.xlu0 %150
  %v153 = vsub.f32 %v106, %v151
  %v154 = vmul.f32 %v153, 1.442695
  %v155 = vpow.pop %v154
  %v156 = vsel %vm138, %v155, 0.0
  %157 = vadd.xlane.f32.xlu0 %v156
  %v158 = vpop.xlane.xlu0 %157
  %v159 = vadd.f32 %v147, %v158
  %vm160 = vcmask 7168
  %161 = vst.msk [vmem:[#allocation4] sm:$0xff] %vm160, %v159
  %162 = vst.msk [vmem:[#allocation3] sm:$0xff] %vm160, %v142
  // Predicated region
  $region22: #{learned_contrastive_loss.1} parent=0 // pred_check
    %p163 = pneg %p15
  $region23: #{learned_contrastive_loss.1} parent=0 // pred_check_branch
    %165 = sbr.rel (%p163) target = $region25
  $region24: #{learned_contrastive_loss.1} parent=0 // pred_region
    %v166 = vld [vmem:[#allocation5] sm:$0xff]
    %v167 = vld [vmem:[#allocation3] sm:$0xff]
    %v168 = vld [vmem:[#allocation4] sm:$0xff]
    %v169 = vlog2.pop %v168
    %v170 = vmul.f32 %v169, 0.6931472
    %v171 = vadd.f32 %v167, %v170
    %v172 = vsub.f32 %v166, %v171
    %173 = vst.msk [vmem:[%s3] sm:$0xff] %vm160, %v172
  $region25: #{learned_contrastive_loss.1} parent=0 // pred_fallthru
    _
  // Predicated region
  $region26: #{learned_contrastive_loss.1} parent=0 // pred_check
    _
  $region27: #{learned_contrastive_loss.1} parent=0 // pred_check_branch
    %175 = sbr.rel (0) target = $region29
  $region28: #{learned_contrastive_loss.1} parent=0 // pred_region
    _
  $region29: #{learned_contrastive_loss.1} parent=0 // pred_fallthru
    _
  // Predicated region
  $region30: #{learned_contrastive_loss.1} parent=0 // pred_check
    _
  $region31: #{learned_contrastive_loss.1} parent=0 // pred_check_branch
    %177 = sbr.rel (0) target = $region33
  $region32: #{learned_contrastive_loss.1} parent=0 // pred_region
    _
  $region33: #{learned_contrastive_loss.1} parent=0 // pred_fallthru
    _

</llo_original>
